<compile_context>
chip_gen: v7x
topology: tpu7x:2x2x1
jax: 0.10.0
libtpu: 0.0.40
codegen_flags: <defaults>
</compile_context>

<pallas_src>
import jax
import jax.numpy as jnp
from jax.experimental import pallas as pl
from jax.experimental.pallas import tpu as pltpu


def decoder_kernel(x_ref, w1_ref, b1_ref, w2_ref, b2_ref, o_ref):
    x = x_ref[...]            # (TM, 3)  f32
    w1 = w1_ref[...]          # (3, 64)  f32

    # Layer 1 on the VPU: unrolled K=3 contraction + bias, then ReLU.
    h = (x[:, 0:1] * w1[0:1, :]
         + x[:, 1:2] * w1[1:2, :]
         + x[:, 2:3] * w1[2:3, :]
         + b1_ref[...])
    h = jnp.maximum(h, 0.0)

    # Layer 2 on the MXU: (TM,64) @ (64,784), bf16 operands, f32 accumulate.
    out = jnp.dot(h.astype(jnp.bfloat16), w2_ref[...],
                  preferred_element_type=jnp.float32)
    o_ref[...] = (out + b2_ref[...]).astype(o_ref.dtype)


def decoder_forward(x, w1, b1, w2, b2, *, tm=128):
    """x: (B, 3) f32. Weights in the PyTorch (in, out) layout (already transposed)."""
    B, in_dim = x.shape
    out_dim = w2.shape[1]

    # Pad the batch up to a multiple of the batch tile.
    b_pad = pl.cdiv(B, tm) * tm
    if b_pad != B:
        x = jnp.pad(x, ((0, b_pad - B), (0, 0)))

    w2_bf16 = w2.astype(jnp.bfloat16)

    out = pl.pallas_call(
        decoder_kernel,
        out_shape=jax.ShapeDtypeStruct((b_pad, out_dim), jnp.float32),
        grid_spec=pltpu.PrefetchScalarGridSpec(
            num_scalar_prefetch=0,
            grid=(b_pad // tm,),
            in_specs=[
                pl.BlockSpec((tm, in_dim), lambda i: (i, 0)),    # x: batch-tiled
                pl.BlockSpec(w1.shape, lambda i: (0, 0)),        # weights stay resident
                pl.BlockSpec(b1.shape, lambda i: (0, 0)),
                pl.BlockSpec(w2.shape, lambda i: (0, 0)),
                pl.BlockSpec(b2.shape, lambda i: (0, 0)),
            ],
            out_specs=pl.BlockSpec((tm, out_dim), lambda i: (i, 0)),
        ),
        compiler_params=pltpu.CompilerParams(
            dimension_semantics=("parallel",),   # megacore sharding on v7x
        ),
    )(x, w1, b1, w2_bf16, b2)

    return out[:B]


def init_params(key):
    # Deterministic init mimicking PyTorch's default Linear init
    # (uniform in +/- 1/sqrt(fan_in)); weights stored as (in, out).
    k1, k2, k3, k4 = jax.random.split(key, 4)
    bound1 = 1.0 / jnp.sqrt(3.0)
    w1 = jax.random.uniform(k1, (3, 64), jnp.float32, -bound1, bound1)
    b1 = jax.random.uniform(k2, (1, 64), jnp.float32, -bound1, bound1)
    bound2 = 1.0 / jnp.sqrt(64.0)
    w2 = jax.random.uniform(k3, (64, 28 * 28), jnp.float32, -bound2, bound2)
    b2 = jax.random.uniform(k4, (1, 28 * 28), jnp.float32, -bound2, bound2)
    return w1, b1, w2, b2


if __name__ == "__main__":
    key = jax.random.PRNGKey(0)
    kx, kp = jax.random.split(key)
    batch = 200  # exercises batch padding (200 -> 256) and a 2-step grid
    x = jax.random.normal(kx, (batch, 3), jnp.float32)
    w1, b1, w2, b2 = init_params(kp)

    out = decoder_forward(x, w1, b1, w2, b2)
    out = jax.block_until_ready(out)

    # Pure-JAX f32 reference check (loosened tolerance for the bf16 w2/h path).
    h_ref = jnp.maximum(x @ w1 + b1, 0.0)
    ref = h_ref @ w2 + b2
    assert out.shape == (batch, 28 * 28)
    assert jnp.allclose(out, ref, atol=5e-2, rtol=5e-2)

    print("KERNEL_OK")
</pallas_src>

<mosaic_0001>
module attributes {stable_mosaic.version = 11 : i64} {
  func.func @decoder_kernel(%arg0: i32, %arg1: memref<128x3xf32, #tpu.memory_space<vmem>>, %arg2: memref<3x64xf32, #tpu.memory_space<vmem>>, %arg3: memref<1x64xf32, #tpu.memory_space<vmem>>, %arg4: memref<64x784xbf16, #tpu.memory_space<vmem>>, %arg5: memref<1x784xf32, #tpu.memory_space<vmem>>, %arg6: memref<128x784xf32, #tpu.memory_space<vmem>>) attributes {dimension_semantics = [#tpu.dimension_semantics<parallel>], iteration_bounds = array<i64: 2>, scalar_prefetch = 0 : i64, scratch_operands = 0 : i64, tpu.core_type = #tpu.core_type<tc>, window_params = [{transform_indices = @transform_0, window_bounds = array<i64: 128, 3>}, {pipeline_mode = #tpu.pipeline_mode<synchronous>, transform_indices = @transform_1, window_bounds = array<i64: 3, 64>}, {pipeline_mode = #tpu.pipeline_mode<synchronous>, transform_indices = @transform_2, window_bounds = array<i64: 1, 64>}, {pipeline_mode = #tpu.pipeline_mode<synchronous>, transform_indices = @transform_3, window_bounds = array<i64: 64, 784>}, {pipeline_mode = #tpu.pipeline_mode<synchronous>, transform_indices = @transform_4, window_bounds = array<i64: 1, 784>}, {transform_indices = @transform_5, window_bounds = array<i64: 128, 784>}]} {
    %c0 = arith.constant 0 : index
    %c0_0 = arith.constant 0 : index
    %0 = vector.load %arg1[%c0, %c0_0] : memref<128x3xf32, #tpu.memory_space<vmem>>, vector<128x3xf32>
    %c0_1 = arith.constant 0 : index
    %c0_2 = arith.constant 0 : index
    %1 = vector.load %arg2[%c0_1, %c0_2] : memref<3x64xf32, #tpu.memory_space<vmem>>, vector<3x64xf32>
    %2 = vector.extract_strided_slice %0 {offsets = [0, 0], sizes = [128, 1], strides = [1, 1]} : vector<128x3xf32> to vector<128x1xf32>
    %3 = vector.extract_strided_slice %1 {offsets = [0, 0], sizes = [1, 64], strides = [1, 1]} : vector<3x64xf32> to vector<1x64xf32>
    %4 = vector.broadcast %2 : vector<128x1xf32> to vector<128x64xf32>
    %5 = vector.broadcast %3 : vector<1x64xf32> to vector<128x64xf32>
    %6 = arith.mulf %4, %5 : vector<128x64xf32>
    %7 = vector.extract_strided_slice %0 {offsets = [0, 1], sizes = [128, 1], strides = [1, 1]} : vector<128x3xf32> to vector<128x1xf32>
    %8 = vector.extract_strided_slice %1 {offsets = [1, 0], sizes = [1, 64], strides = [1, 1]} : vector<3x64xf32> to vector<1x64xf32>
    %9 = vector.broadcast %7 : vector<128x1xf32> to vector<128x64xf32>
    %10 = vector.broadcast %8 : vector<1x64xf32> to vector<128x64xf32>
    %11 = arith.mulf %9, %10 : vector<128x64xf32>
    %12 = arith.addf %6, %11 : vector<128x64xf32>
    %13 = vector.extract_strided_slice %0 {offsets = [0, 2], sizes = [128, 1], strides = [1, 1]} : vector<128x3xf32> to vector<128x1xf32>
    %14 = vector.extract_strided_slice %1 {offsets = [2, 0], sizes = [1, 64], strides = [1, 1]} : vector<3x64xf32> to vector<1x64xf32>
    %15 = vector.broadcast %13 : vector<128x1xf32> to vector<128x64xf32>
    %16 = vector.broadcast %14 : vector<1x64xf32> to vector<128x64xf32>
    %17 = arith.mulf %15, %16 : vector<128x64xf32>
    %18 = arith.addf %12, %17 : vector<128x64xf32>
    %c0_3 = arith.constant 0 : index
    %c0_4 = arith.constant 0 : index
    %19 = vector.load %arg3[%c0_3, %c0_4] : memref<1x64xf32, #tpu.memory_space<vmem>>, vector<1x64xf32>
    %20 = vector.broadcast %19 : vector<1x64xf32> to vector<128x64xf32>
    %21 = arith.addf %18, %20 : vector<128x64xf32>
    %cst = arith.constant 0.000000e+00 : f32
    %22 = vector.broadcast %cst : f32 to vector<128x64xf32>
    %23 = arith.maximumf %21, %22 : vector<128x64xf32>
    %24 = arith.truncf %23 : vector<128x64xf32> to vector<128x64xbf16>
    %c0_5 = arith.constant 0 : index
    %c0_6 = arith.constant 0 : index
    %25 = vector.load %arg4[%c0_5, %c0_6] : memref<64x784xbf16, #tpu.memory_space<vmem>>, vector<64x784xbf16>
    %cst_7 = arith.constant dense<0.000000e+00> : vector<128x784xf32>
    %26 = tpu.matmul %24, %25, %cst_7 {dimension_numbers = #tpu.dot_dimension_numbers<[1], [0], [0], [1], [0, 0, 1, 1], [], []>} : vector<128x64xbf16>, vector<64x784xbf16>, vector<128x784xf32> -> vector<128x784xf32>
    %c0_8 = arith.constant 0 : index
    %c0_9 = arith.constant 0 : index
    %27 = vector.load %arg5[%c0_8, %c0_9] : memref<1x784xf32, #tpu.memory_space<vmem>>, vector<1x784xf32>
    %28 = vector.broadcast %27 : vector<1x784xf32> to vector<128x784xf32>
    %29 = arith.addf %26, %28 : vector<128x784xf32>
    %c0_10 = arith.constant 0 : index
    %c0_11 = arith.constant 0 : index
    %30 = vector.load %arg6[%c0_10, %c0_11] : memref<128x784xf32, #tpu.memory_space<vmem>>, vector<128x784xf32>
    tpu.vector_store %arg6[%c0_10, %c0_11], %29 {strides = array<i32>} : memref<128x784xf32, #tpu.memory_space<vmem>>, vector<128x784xf32>,
    return
  }
  func.func @transform_0(%arg0: i32) -> (i32, i32) {
    %c0_i32 = arith.constant 0 : i32
    %c0_i32_0 = arith.constant 0 : i32
    return %arg0, %c0_i32 : i32, i32
  }
  func.func @transform_1(%arg0: i32) -> (i32, i32) {
    %c0_i32 = arith.constant 0 : i32
    %c0_i32_0 = arith.constant 0 : i32
    %c0_i32_1 = arith.constant 0 : i32
    return %c0_i32, %c0_i32_0 : i32, i32
  }
  func.func @transform_2(%arg0: i32) -> (i32, i32) {
    %c0_i32 = arith.constant 0 : i32
    %c0_i32_0 = arith.constant 0 : i32
    %c0_i32_1 = arith.constant 0 : i32
    return %c0_i32, %c0_i32_0 : i32, i32
  }
  func.func @transform_3(%arg0: i32) -> (i32, i32) {
    %c0_i32 = arith.constant 0 : i32
    %c0_i32_0 = arith.constant 0 : i32
    %c0_i32_1 = arith.constant 0 : i32
    return %c0_i32, %c0_i32_0 : i32, i32
  }
  func.func @transform_4(%arg0: i32) -> (i32, i32) {
    %c0_i32 = arith.constant 0 : i32
    %c0_i32_0 = arith.constant 0 : i32
    %c0_i32_1 = arith.constant 0 : i32
    return %c0_i32, %c0_i32_0 : i32, i32
  }
  func.func @transform_5(%arg0: i32) -> (i32, i32) {
    %c0_i32 = arith.constant 0 : i32
    %c0_i32_0 = arith.constant 0 : i32
    return %arg0, %c0_i32 : i32, i32
  }
}

</mosaic_0001>

<llo_original>
// kernel: tpu_custom_call.1
$region0: #{tpu_custom_call.1}
  #allocation0 [shape = 'u32[]', space=smem, size = 0x4, offset = 0x4, fixed_abs, tag = 'smem constant byte address 0x4 - core index']
  #allocation1 [shape = 'u32[144,128]{1,0:T(1,128)}', space=vmem, size = 0x12000, scoped, tag = 'internal scratch']
  %s0 = inlined_call_operand.vmem [shape: f32[256,3], index: 0, kind: input, shape index: {}]
  %s1 = inlined_call_operand.vmem [shape: f32[3,64], index: 1, kind: input, shape index: {}]
  %s2 = inlined_call_operand.vmem [shape: f32[1,64], index: 2, kind: input, shape index: {}]
  %s3 = inlined_call_operand.vmem [shape: bf16[64,784], index: 3, kind: input, shape index: {}]
  %s4 = inlined_call_operand.vmem [shape: f32[1,784], index: 4, kind: input, shape index: {}]
  %s5 = inlined_call_operand.vmem [shape: f32[256,784], index: 5, kind: output, shape index: {}]
  %s6 = sld [smem:[#allocation0]]
  $region53: #{tpu_custom_call.1} parent=0
    _
  %s8 = ssub.s32 1, %s6
  %s9 = scalar_select 0, %s8, %s6
  loop: start=0, step=1, limit=4
  $region2: #{tpu_custom_call.1} parent=0 // loop_pre_header
    _
  $region3: #{tpu_custom_call.1} parent=0 // loop_header
    %s11 = sphi 0, %s15
    %p12 = scmp.ge.s32.totalorder %s11, 4
    %s21 = sphi 0, %s23
    %s24 = sphi 0, %s21
    %s25 = sphi 0, %s24
    %s41 = sphi 0, %s25
    %s45 = sphi 0, %s45
    %s47 = sphi 0, %s45
    %s48 = sphi 0, %s47
    %s62 = sphi 0, %s48
    %s66 = sphi 0, %s66
    %s68 = sphi 0, %s66
    %s69 = sphi 0, %s68
    %s83 = sphi 0, %s69
    %s87 = sphi 0, %s87
    %s89 = sphi 0, %s87
    %s90 = sphi 0, %s89
    %s104 = sphi 0, %s90
    %s108 = sphi 0, %s108
    %s110 = sphi 0, %s108
    %s111 = sphi 0, %s110
    %s125 = sphi 0, %s111
    %s131 = sphi 0, %s133
    %s134 = sphi 0, %s131
    %s135 = sphi 0, %s134
    %s151 = sphi 0, %s135
  $region4: #{tpu_custom_call.1} parent=0 // loop_header_branch
    %14 = sbr.rel (%p12) target = $region8
  $region5: #{tpu_custom_call.1} parent=0 // loop_body
    %s16 = ssub.s32 %s11, 1
    %s17 = ssub.s32 %s11, 2
    %s18 = sadd.s32 %s11, 1
    %s19 = ssub.s32 %s11, %s18
    %p20 = scmp.eq.s32.totalorder %s19, 0
    %s22 = sadd.s32 %s21, 1
    %s23 = scalar_select %p20, %s21, %s22
    %p26 = pneg %p20
    %p27 = scmp.eq.s32.totalorder %s11, 1
    %p28 = por %p26, %p27
    %p29 = scmp.ne.s32.totalorder %s21, %s24
    %p30 = scmp.eq.s32.totalorder %s11, 0
    %p31 = por %p29, %p30
    %p32 = scmp.ne.s32.totalorder %s21, %s24
    %p33 = scmp.eq.s32.totalorder %s16, 1
    %p34 = por %p32, %p33
    %p35 = scmp.ne.s32.totalorder %s24, %s25
    %p36 = scmp.eq.s32.totalorder %s16, 0
    %p37 = por %p35, %p36
    %p38 = scmp.ne.s32.totalorder %s24, %s25
    %p39 = scmp.eq.s32.totalorder %s17, 1
    %p40 = por %p38, %p39
    %p42 = scmp.ne.s32.totalorder %s25, %s41
    %p43 = scmp.eq.s32.totalorder %s17, 0
    %p44 = por %p42, %p43
    %s46 = sadd.s32 %s45, 1
    %p49 = scmp.eq.s32.totalorder %s11, 1
    %p50 = scmp.ne.s32.totalorder %s45, %s47
    %p51 = scmp.eq.s32.totalorder %s11, 0
    %p52 = por %p50, %p51
    %p53 = scmp.ne.s32.totalorder %s45, %s47
    %p54 = scmp.eq.s32.totalorder %s16, 1
    %p55 = por %p53, %p54
    %p56 = scmp.ne.s32.totalorder %s47, %s48
    %p57 = scmp.eq.s32.totalorder %s16, 0
    %p58 = por %p56, %p57
    %p59 = scmp.ne.s32.totalorder %s47, %s48
    %p60 = scmp.eq.s32.totalorder %s17, 1
    %p61 = por %p59, %p60
    %p63 = scmp.ne.s32.totalorder %s48, %s62
    %p64 = scmp.eq.s32.totalorder %s17, 0
    %p65 = por %p63, %p64
    %s67 = sadd.s32 %s66, 1
    %p70 = scmp.eq.s32.totalorder %s11, 1
    %p71 = scmp.ne.s32.totalorder %s66, %s68
    %p72 = scmp.eq.s32.totalorder %s11, 0
    %p73 = por %p71, %p72
    %p74 = scmp.ne.s32.totalorder %s66, %s68
    %p75 = scmp.eq.s32.totalorder %s16, 1
    %p76 = por %p74, %p75
    %p77 = scmp.ne.s32.totalorder %s68, %s69
    %p78 = scmp.eq.s32.totalorder %s16, 0
    %p79 = por %p77, %p78
    %p80 = scmp.ne.s32.totalorder %s68, %s69
    %p81 = scmp.eq.s32.totalorder %s17, 1
    %p82 = por %p80, %p81
    %p84 = scmp.ne.s32.totalorder %s69, %s83
    %p85 = scmp.eq.s32.totalorder %s17, 0
    %p86 = por %p84, %p85
    %s88 = sadd.s32 %s87, 1
    %p91 = scmp.eq.s32.totalorder %s11, 1
    %p92 = scmp.ne.s32.totalorder %s87, %s89
    %p93 = scmp.eq.s32.totalorder %s11, 0
    %p94 = por %p92, %p93
    %p95 = scmp.ne.s32.totalorder %s87, %s89
    %p96 = scmp.eq.s32.totalorder %s16, 1
    %p97 = por %p95, %p96
    %p98 = scmp.ne.s32.totalorder %s89, %s90
    %p99 = scmp.eq.s32.totalorder %s16, 0
    %p100 = por %p98, %p99
    %p101 = scmp.ne.s32.totalorder %s89, %s90
    %p102 = scmp.eq.s32.totalorder %s17, 1
    %p103 = por %p101, %p102
    %p105 = scmp.ne.s32.totalorder %s90, %s104
    %p106 = scmp.eq.s32.totalorder %s17, 0
    %p107 = por %p105, %p106
    %s109 = sadd.s32 %s108, 1
    %p112 = scmp.eq.s32.totalorder %s11, 1
    %p113 = scmp.ne.s32.totalorder %s108, %s110
    %p114 = scmp.eq.s32.totalorder %s11, 0
    %p115 = por %p113, %p114
    %p116 = scmp.ne.s32.totalorder %s108, %s110
    %p117 = scmp.eq.s32.totalorder %s16, 1
    %p118 = por %p116, %p117
    %p119 = scmp.ne.s32.totalorder %s110, %s111
    %p120 = scmp.eq.s32.totalorder %s16, 0
    %p121 = por %p119, %p120
    %p122 = scmp.ne.s32.totalorder %s110, %s111
    %p123 = scmp.eq.s32.totalorder %s17, 1
    %p124 = por %p122, %p123
    %p126 = scmp.ne.s32.totalorder %s111, %s125
    %p127 = scmp.eq.s32.totalorder %s17, 0
    %p128 = por %p126, %p127
    %s129 = ssub.s32 %s11, %s18
    %p130 = scmp.eq.s32.totalorder %s129, 0
    %s132 = sadd.s32 %s131, 1
    %s133 = scalar_select %p130, %s131, %s132
    %p136 = pneg %p130
    %p137 = scmp.eq.s32.totalorder %s11, 1
    %p138 = por %p136, %p137
    %p139 = scmp.ne.s32.totalorder %s131, %s134
    %p140 = scmp.eq.s32.totalorder %s11, 0
    %p141 = por %p139, %p140
    %p142 = scmp.ne.s32.totalorder %s131, %s134
    %p143 = scmp.eq.s32.totalorder %s16, 1
    %p144 = por %p142, %p143
    %p145 = scmp.ne.s32.totalorder %s134, %s135
    %p146 = scmp.eq.s32.totalorder %s16, 0
    %p147 = por %p145, %p146
    %p148 = scmp.ne.s32.totalorder %s134, %s135
    %p149 = scmp.eq.s32.totalorder %s17, 1
    %p150 = por %p148, %p149
    %p152 = scmp.ne.s32.totalorder %s135, %s151
    %p153 = scmp.eq.s32.totalorder %s17, 0
    %p154 = por %p152, %p153
    %p155 = scmp.le.s32.totalorder 1, %s11
    %p156 = scmp.lt.s32.totalorder %s11, 3
    %p157 = pnand %p155, %p156
    %p158 = pneg %p157
    // Predicated region
    $region9: #{tpu_custom_call.1} parent=5 // pred_check
      _
    $region10: #{tpu_custom_call.1} parent=5 // pred_check_branch
      %160 = sbr.rel (%p157) target = $region12
    $region11: #{tpu_custom_call.1} parent=5 // pred_region
      %s161 = ssub.s32 %s11, 1
      // Predicated region
      $region13: #{tpu_custom_call.1} parent=11 // pred_check
        %p162 = pneg %p58
      $region14: #{tpu_custom_call.1} parent=11 // pred_check_branch
        %164 = sbr.rel (%p162) target = $region16
      $region15: #{tpu_custom_call.1} parent=11 // pred_region
        _
      $region16: #{tpu_custom_call.1} parent=11 // pred_fallthru
        _
      // Predicated region
      $region17: #{tpu_custom_call.1} parent=11 // pred_check
        %p165 = pneg %p79
      $region18: #{tpu_custom_call.1} parent=11 // pred_check_branch
        %167 = sbr.rel (%p165) target = $region20
      $region19: #{tpu_custom_call.1} parent=11 // pred_region
        _
      $region20: #{tpu_custom_call.1} parent=11 // pred_fallthru
        _
      // Predicated region
      $region21: #{tpu_custom_call.1} parent=11 // pred_check
        %p168 = pneg %p100
      $region22: #{tpu_custom_call.1} parent=11 // pred_check_branch
        %170 = sbr.rel (%p168) target = $region24
      $region23: #{tpu_custom_call.1} parent=11 // pred_region
        _
      $region24: #{tpu_custom_call.1} parent=11 // pred_fallthru
        _
      // Predicated region
      $region25: #{tpu_custom_call.1} parent=11 // pred_check
        %p171 = pneg %p121
      $region26: #{tpu_custom_call.1} parent=11 // pred_check_branch
        %173 = sbr.rel (%p171) target = $region28
      $region27: #{tpu_custom_call.1} parent=11 // pred_region
        _
      $region28: #{tpu_custom_call.1} parent=11 // pred_fallthru
        _
    $region12: #{tpu_custom_call.1} parent=5 // pred_fallthru
      _
    %p174 = scmp.lt.s32.totalorder %s11, 2
    // Predicated region
    $region29: #{tpu_custom_call.1} parent=5 // pred_check
      %p175 = pneg %p174
    $region30: #{tpu_custom_call.1} parent=5 // pred_check_branch
      %177 = sbr.rel (%p175) target = $region32
    $region31: #{tpu_custom_call.1} parent=5 // pred_region
      // Predicated region
      $region33: #{tpu_custom_call.1} parent=31 // pred_check
        %p178 = pneg %p31
      $region34: #{tpu_custom_call.1} parent=31 // pred_check_branch
        %180 = sbr.rel (%p178) target = $region36
      $region35: #{tpu_custom_call.1} parent=31 // pred_region
        %s181 = smul.u32 16, %s11
        %p182 = scmp.lt.s32.totalorder %s181, 31
        %s183 = scalar_select %p182, %s181, 31
        %s184 = smul.addr %s183, 8
        %s185 = scalar_lea.vmem %s0, %s184
        %s186 = smul.u32 16, %s11
      $region36: #{tpu_custom_call.1} parent=31 // pred_fallthru
        _
    $region32: #{tpu_custom_call.1} parent=5 // pred_fallthru
      _
    %p187 = scmp.le.s32.totalorder 1, %s11
    %p188 = scmp.lt.s32.totalorder %s11, 3
    %p189 = pnand %p187, %p188
    %p190 = pneg %p189
    // Predicated region
    $region37: #{tpu_custom_call.1} parent=5 // pred_check
      _
    $region38: #{tpu_custom_call.1} parent=5 // pred_check_branch
      %192 = sbr.rel (%p189) target = $region40
    $region39: #{tpu_custom_call.1} parent=5 // pred_region
      %s193 = ssub.s32 %s11, 1
      %s194 = smul.u32 16, %s16
      %p195 = scmp.lt.s32.totalorder %s194, 31
      %s196 = scalar_select %p195, %s194, 31
      %s197 = smul.addr %s196, 8
      %s198 = scalar_lea.vmem %s0, %s197
      %p199 = pneg %p37
      %p200 = pneg %p34
      %p201 = pneg %p58
      %p202 = pneg %p55
      %p203 = pneg %p79
      %p204 = pneg %p76
      %p205 = pneg %p100
      %p206 = pneg %p97
      %p207 = pneg %p121
      %p208 = pneg %p118
      %p209 = pneg %p147
      %p210 = pneg %p144
      %s211 = smul.u32 16, %s16
      %p212 = scmp.lt.s32.totalorder %s211, 31
      %s213 = scalar_select %p212, %s211, 31
      %s214 = smul.addr %s213, 7
      %s215 = smul.addr %s214, 8
      %s216 = scalar_lea.vmem %s5, %s215
      %s217 = smul.u32 16, %s16
      %p218 = scmp.lt.s32.totalorder %s217, 31
      %s219 = scalar_select %p218, %s217, 31
      %s220 = smul.addr %s219, 8
      %s221 = scalar_lea.vmem %s0, %s220
      %s222 = smul.u32 16, %s16
      %s223 = smul.u32 16, %s16
      %p224 = scmp.lt.s32.totalorder %s223, 31
      %s225 = scalar_select %p224, %s223, 31
      %s226 = smul.addr %s225, 7
      %s227 = smul.addr %s226, 8
      %s228 = scalar_lea.vmem %s5, %s227
      %s229 = smul.u32 16, %s16
      %v231 = vld [vmem:[%s221] sm:$0xff]
      %v232 = vld [vmem:[%s221 + $0x8] sm:$0xff]
      %v233 = vld [vmem:[%s221 + $0x10] sm:$0xff]
      %v234 = vld [vmem:[%s221 + $0x18] sm:$0xff]
      %v235 = vld [vmem:[%s221 + $0x20] sm:$0xff]
      %v236 = vld [vmem:[%s221 + $0x28] sm:$0xff]
      %v237 = vld [vmem:[%s221 + $0x30] sm:$0xff]
      %v238 = vld [vmem:[%s221 + $0x38] sm:$0xff]
      %v239 = vld [vmem:[%s221 + $0x40] sm:$0xff]
      %v240 = vld [vmem:[%s221 + $0x48] sm:$0xff]
      %v241 = vld [vmem:[%s221 + $0x50] sm:$0xff]
      %v242 = vld [vmem:[%s221 + $0x58] sm:$0xff]
      %v243 = vld [vmem:[%s221 + $0x60] sm:$0xff]
      %v244 = vld [vmem:[%s221 + $0x68] sm:$0xff]
      %v245 = vld [vmem:[%s221 + $0x70] sm:$0xff]
      %v246 = vld [vmem:[%s221 + $0x78] sm:$0xff]
      %v247 = vld [vmem:[%s1] sm:$0x7]
      %249 = vset.pattern.permute.xlu0 0
      %250 = vperm.xlu0 %249, %v231
      %v251 = vpop.permute.xlu0 %250
      %254 = vset.pattern.permute.xlu0 0
      %255 = vperm.xlu0 %254, %v232
      %v256 = vpop.permute.xlu0 %255
      %259 = vset.pattern.permute.xlu0 0
      %260 = vperm.xlu0 %259, %v233
      %v261 = vpop.permute.xlu0 %260
      %264 = vset.pattern.permute.xlu0 0
      %265 = vperm.xlu0 %264, %v234
      %v266 = vpop.permute.xlu0 %265
      %269 = vset.pattern.permute.xlu0 0
      %270 = vperm.xlu0 %269, %v235
      %v271 = vpop.permute.xlu0 %270
      %274 = vset.pattern.permute.xlu0 0
      %275 = vperm.xlu0 %274, %v236
      %v276 = vpop.permute.xlu0 %275
      %279 = vset.pattern.permute.xlu0 0
      %280 = vperm.xlu0 %279, %v237
      %v281 = vpop.permute.xlu0 %280
      %284 = vset.pattern.permute.xlu0 0
      %285 = vperm.xlu0 %284, %v238
      %v286 = vpop.permute.xlu0 %285
      %289 = vset.pattern.permute.xlu0 0
      %290 = vperm.xlu0 %289, %v239
      %v291 = vpop.permute.xlu0 %290
      %294 = vset.pattern.permute.xlu0 0
      %295 = vperm.xlu0 %294, %v240
      %v296 = vpop.permute.xlu0 %295
      %299 = vset.pattern.permute.xlu0 0
      %300 = vperm.xlu0 %299, %v241
      %v301 = vpop.permute.xlu0 %300
      %304 = vset.pattern.permute.xlu0 0
      %305 = vperm.xlu0 %304, %v242
      %v306 = vpop.permute.xlu0 %305
      %309 = vset.pattern.permute.xlu0 0
      %310 = vperm.xlu0 %309, %v243
      %v311 = vpop.permute.xlu0 %310
      %314 = vset.pattern.permute.xlu0 0
      %315 = vperm.xlu0 %314, %v244
      %v316 = vpop.permute.xlu0 %315
      %319 = vset.pattern.permute.xlu0 0
      %320 = vperm.xlu0 %319, %v245
      %v321 = vpop.permute.xlu0 %320
      %324 = vset.pattern.permute.xlu0 0
      %325 = vperm.xlu0 %324, %v246
      %v326 = vpop.permute.xlu0 %325
      %v328 = vlaneseq
      %v329 = vshrl.u32 %v328, 7
      %v330 = vsub.s32 0, %v329
      %v331 = vrot.slane %v247, %v330
      %v332 = vmul.f32 %v251, %v331
      %v333 = vmul.f32 %v256, %v331
      %v334 = vmul.f32 %v261, %v331
      %v335 = vmul.f32 %v266, %v331
      %v336 = vmul.f32 %v271, %v331
      %v337 = vmul.f32 %v276, %v331
      %v338 = vmul.f32 %v281, %v331
      %v339 = vmul.f32 %v286, %v331
      %v340 = vmul.f32 %v291, %v331
      %v341 = vmul.f32 %v296, %v331
      %v342 = vmul.f32 %v301, %v331
      %v343 = vmul.f32 %v306, %v331
      %v344 = vmul.f32 %v311, %v331
      %v345 = vmul.f32 %v316, %v331
      %v346 = vmul.f32 %v321, %v331
      %v347 = vmul.f32 %v326, %v331
      %348 = vset.pattern.permute.xlu0 1
      %349 = vperm.xlu0 %348, %v231
      %v350 = vpop.permute.xlu0 %349
      %352 = vset.pattern.permute.xlu0 1
      %353 = vperm.xlu0 %352, %v232
      %v354 = vpop.permute.xlu0 %353
      %356 = vset.pattern.permute.xlu0 1
      %357 = vperm.xlu0 %356, %v233
      %v358 = vpop.permute.xlu0 %357
      %360 = vset.pattern.permute.xlu0 1
      %361 = vperm.xlu0 %360, %v234
      %v362 = vpop.permute.xlu0 %361
      %364 = vset.pattern.permute.xlu0 1
      %365 = vperm.xlu0 %364, %v235
      %v366 = vpop.permute.xlu0 %365
      %368 = vset.pattern.permute.xlu0 1
      %369 = vperm.xlu0 %368, %v236
      %v370 = vpop.permute.xlu0 %369
      %372 = vset.pattern.permute.xlu0 1
      %373 = vperm.xlu0 %372, %v237
      %v374 = vpop.permute.xlu0 %373
      %376 = vset.pattern.permute.xlu0 1
      %377 = vperm.xlu0 %376, %v238
      %v378 = vpop.permute.xlu0 %377
      %380 = vset.pattern.permute.xlu0 1
      %381 = vperm.xlu0 %380, %v239
      %v382 = vpop.permute.xlu0 %381
      %384 = vset.pattern.permute.xlu0 1
      %385 = vperm.xlu0 %384, %v240
      %v386 = vpop.permute.xlu0 %385
      %388 = vset.pattern.permute.xlu0 1
      %389 = vperm.xlu0 %388, %v241
      %v390 = vpop.permute.xlu0 %389
      %392 = vset.pattern.permute.xlu0 1
      %393 = vperm.xlu0 %392, %v242
      %v394 = vpop.permute.xlu0 %393
      %396 = vset.pattern.permute.xlu0 1
      %397 = vperm.xlu0 %396, %v243
      %v398 = vpop.permute.xlu0 %397
      %400 = vset.pattern.permute.xlu0 1
      %401 = vperm.xlu0 %400, %v244
      %v402 = vpop.permute.xlu0 %401
      %404 = vset.pattern.permute.xlu0 1
      %405 = vperm.xlu0 %404, %v245
      %v406 = vpop.permute.xlu0 %405
      %408 = vset.pattern.permute.xlu0 1
      %409 = vperm.xlu0 %408, %v246
      %v410 = vpop.permute.xlu0 %409
      %v412 = vlaneseq
      %v413 = vshrl.u32 %v412, 7
      %v414 = vsub.s32 1, %v413
      %v415 = vrot.slane %v247, %v414
      %v416 = vmul.f32 %v350, %v415
      %v417 = vmul.f32 %v354, %v415
      %v418 = vmul.f32 %v358, %v415
      %v419 = vmul.f32 %v362, %v415
      %v420 = vmul.f32 %v366, %v415
      %v421 = vmul.f32 %v370, %v415
      %v422 = vmul.f32 %v374, %v415
      %v423 = vmul.f32 %v378, %v415
      %v424 = vmul.f32 %v382, %v415
      %v425 = vmul.f32 %v386, %v415
      %v426 = vmul.f32 %v390, %v415
      %v427 = vmul.f32 %v394, %v415
      %v428 = vmul.f32 %v398, %v415
      %v429 = vmul.f32 %v402, %v415
      %v430 = vmul.f32 %v406, %v415
      %v431 = vmul.f32 %v410, %v415
      %v432 = vadd.f32 %v332, %v416
      %v433 = vadd.f32 %v333, %v417
      %v434 = vadd.f32 %v334, %v418
      %v435 = vadd.f32 %v335, %v419
      %v436 = vadd.f32 %v336, %v420
      %v437 = vadd.f32 %v337, %v421
      %v438 = vadd.f32 %v338, %v422
      %v439 = vadd.f32 %v339, %v423
      %v440 = vadd.f32 %v340, %v424
      %v441 = vadd.f32 %v341, %v425
      %v442 = vadd.f32 %v342, %v426
      %v443 = vadd.f32 %v343, %v427
      %v444 = vadd.f32 %v344, %v428
      %v445 = vadd.f32 %v345, %v429
      %v446 = vadd.f32 %v346, %v430
      %v447 = vadd.f32 %v347, %v431
      %448 = vset.pattern.permute.xlu0 2
      %449 = vperm.xlu0 %448, %v231
      %v450 = vpop.permute.xlu0 %449
      %452 = vset.pattern.permute.xlu0 2
      %453 = vperm.xlu0 %452, %v232
      %v454 = vpop.permute.xlu0 %453
      %456 = vset.pattern.permute.xlu0 2
      %457 = vperm.xlu0 %456, %v233
      %v458 = vpop.permute.xlu0 %457
      %460 = vset.pattern.permute.xlu0 2
      %461 = vperm.xlu0 %460, %v234
      %v462 = vpop.permute.xlu0 %461
      %464 = vset.pattern.permute.xlu0 2
      %465 = vperm.xlu0 %464, %v235
      %v466 = vpop.permute.xlu0 %465
      %468 = vset.pattern.permute.xlu0 2
      %469 = vperm.xlu0 %468, %v236
      %v470 = vpop.permute.xlu0 %469
      %472 = vset.pattern.permute.xlu0 2
      %473 = vperm.xlu0 %472, %v237
      %v474 = vpop.permute.xlu0 %473
      %476 = vset.pattern.permute.xlu0 2
      %477 = vperm.xlu0 %476, %v238
      %v478 = vpop.permute.xlu0 %477
      %480 = vset.pattern.permute.xlu0 2
      %481 = vperm.xlu0 %480, %v239
      %v482 = vpop.permute.xlu0 %481
      %484 = vset.pattern.permute.xlu0 2
      %485 = vperm.xlu0 %484, %v240
      %v486 = vpop.permute.xlu0 %485
      %488 = vset.pattern.permute.xlu0 2
      %489 = vperm.xlu0 %488, %v241
      %v490 = vpop.permute.xlu0 %489
      %492 = vset.pattern.permute.xlu0 2
      %493 = vperm.xlu0 %492, %v242
      %v494 = vpop.permute.xlu0 %493
      %496 = vset.pattern.permute.xlu0 2
      %497 = vperm.xlu0 %496, %v243
      %v498 = vpop.permute.xlu0 %497
      %500 = vset.pattern.permute.xlu0 2
      %501 = vperm.xlu0 %500, %v244
      %v502 = vpop.permute.xlu0 %501
      %504 = vset.pattern.permute.xlu0 2
      %505 = vperm.xlu0 %504, %v245
      %v506 = vpop.permute.xlu0 %505
      %508 = vset.pattern.permute.xlu0 2
      %509 = vperm.xlu0 %508, %v246
      %v510 = vpop.permute.xlu0 %509
      %v512 = vlaneseq
      %v513 = vshrl.u32 %v512, 7
      %v514 = vsub.s32 2, %v513
      %v515 = vrot.slane %v247, %v514
      %v516 = vmul.f32 %v450, %v515
      %v517 = vmul.f32 %v454, %v515
      %v518 = vmul.f32 %v458, %v515
      %v519 = vmul.f32 %v462, %v515
      %v520 = vmul.f32 %v466, %v515
      %v521 = vmul.f32 %v470, %v515
      %v522 = vmul.f32 %v474, %v515
      %v523 = vmul.f32 %v478, %v515
      %v524 = vmul.f32 %v482, %v515
      %v525 = vmul.f32 %v486, %v515
      %v526 = vmul.f32 %v490, %v515
      %v527 = vmul.f32 %v494, %v515
      %v528 = vmul.f32 %v498, %v515
      %v529 = vmul.f32 %v502, %v515
      %v530 = vmul.f32 %v506, %v515
      %v531 = vmul.f32 %v510, %v515
      %v532 = vadd.f32 %v432, %v516
      %v533 = vadd.f32 %v433, %v517
      %v534 = vadd.f32 %v434, %v518
      %v535 = vadd.f32 %v435, %v519
      %v536 = vadd.f32 %v436, %v520
      %v537 = vadd.f32 %v437, %v521
      %v538 = vadd.f32 %v438, %v522
      %v539 = vadd.f32 %v439, %v523
      %v540 = vadd.f32 %v440, %v524
      %v541 = vadd.f32 %v441, %v525
      %v542 = vadd.f32 %v442, %v526
      %v543 = vadd.f32 %v443, %v527
      %v544 = vadd.f32 %v444, %v528
      %v545 = vadd.f32 %v445, %v529
      %v546 = vadd.f32 %v446, %v530
      %v547 = vadd.f32 %v447, %v531
      %v548 = vld [vmem:[%s2] sm:$0x1]
      %v550 = vlaneseq
      %v551 = vshrl.u32 %v550, 7
      %v552 = vsub.s32 0, %v551
      %v553 = vrot.slane %v548, %v552
      %v555 = vadd.f32 %v532, %v553
      %v556 = vadd.f32 %v533, %v553
      %v557 = vadd.f32 %v534, %v553
      %v558 = vadd.f32 %v535, %v553
      %v559 = vadd.f32 %v536, %v553
      %v560 = vadd.f32 %v537, %v553
      %v561 = vadd.f32 %v538, %v553
      %v562 = vadd.f32 %v539, %v553
      %v563 = vadd.f32 %v540, %v553
      %v564 = vadd.f32 %v541, %v553
      %v565 = vadd.f32 %v542, %v553
      %v566 = vadd.f32 %v543, %v553
      %v567 = vadd.f32 %v544, %v553
      %v568 = vadd.f32 %v545, %v553
      %v569 = vadd.f32 %v546, %v553
      %v570 = vadd.f32 %v547, %v553
      %v571 = vmax.f32 %v555, 0.0
      %v572 = vmax.f32 %v556, 0.0
      %v573 = vmax.f32 %v557, 0.0
      %v574 = vmax.f32 %v558, 0.0
      %v575 = vmax.f32 %v559, 0.0
      %v576 = vmax.f32 %v560, 0.0
      %v577 = vmax.f32 %v561, 0.0
      %v578 = vmax.f32 %v562, 0.0
      %v579 = vmax.f32 %v563, 0.0
      %v580 = vmax.f32 %v564, 0.0
      %v581 = vmax.f32 %v565, 0.0
      %v582 = vmax.f32 %v566, 0.0
      %v583 = vmax.f32 %v567, 0.0
      %v584 = vmax.f32 %v568, 0.0
      %v585 = vmax.f32 %v569, 0.0
      %v586 = vmax.f32 %v570, 0.0
      %v587 = vpack.c.bf16 %v572, %v571
      %v588 = vpack.c.bf16 %v574, %v573
      %v589 = vpack.c.bf16 %v576, %v575
      %v590 = vpack.c.bf16 %v578, %v577
      %v591 = vpack.c.bf16 %v580, %v579
      %v592 = vpack.c.bf16 %v582, %v581
      %v593 = vpack.c.bf16 %v584, %v583
      %v594 = vpack.c.bf16 %v586, %v585
      %v595 = vld [vmem:[%s3] sm:$0xff]
      %v596 = vld [vmem:[%s3 + $0x8] sm:$0xff]
      %v597 = vld [vmem:[%s3 + $0x10] sm:$0xff]
      %v598 = vld [vmem:[%s3 + $0x18] sm:$0xf]
      %v599 = vld [vmem:[%s3 + $0x1c] sm:$0xff]
      %v600 = vld [vmem:[%s3 + $0x24] sm:$0xff]
      %v601 = vld [vmem:[%s3 + $0x2c] sm:$0xff]
      %v602 = vld [vmem:[%s3 + $0x34] sm:$0xf]
      %v603 = vld [vmem:[%s3 + $0x38] sm:$0xff]
      %v604 = vld [vmem:[%s3 + $0x40] sm:$0xff]
      %v605 = vld [vmem:[%s3 + $0x48] sm:$0xff]
      %v606 = vld [vmem:[%s3 + $0x50] sm:$0xf]
      %v607 = vld [vmem:[%s3 + $0x54] sm:$0xff]
      %v608 = vld [vmem:[%s3 + $0x5c] sm:$0xff]
      %v609 = vld [vmem:[%s3 + $0x64] sm:$0xff]
      %v610 = vld [vmem:[%s3 + $0x6c] sm:$0xf]
      %v611 = vld [vmem:[%s3 + $0x70] sm:$0xff]
      %v612 = vld [vmem:[%s3 + $0x78] sm:$0xff]
      %v613 = vld [vmem:[%s3 + $0x80] sm:$0xff]
      %v614 = vld [vmem:[%s3 + $0x88] sm:$0xf]
      %v615 = vld [vmem:[%s3 + $0x8c] sm:$0xff]
      %v616 = vld [vmem:[%s3 + $0x94] sm:$0xff]
      %v617 = vld [vmem:[%s3 + $0x9c] sm:$0xff]
      %v618 = vld [vmem:[%s3 + $0xa4] sm:$0xf]
      %v619 = vld [vmem:[%s3 + $0xa8] sm:$0xff]
      %v620 = vld [vmem:[%s3 + $0xb0] sm:$0xff]
      %v621 = vld [vmem:[%s3 + $0xb8] sm:$0xff]
      %v622 = vld [vmem:[%s3 + $0xc0] sm:$0xf]
      %v623 = vld [vmem:[%s3 + $0xc4] sm:$0xff]
      %v624 = vld [vmem:[%s3 + $0xcc] sm:$0xff]
      %v625 = vld [vmem:[%s3 + $0xd4] sm:$0xff]
      %v626 = vld [vmem:[%s3 + $0xdc] sm:$0xf]
      %v627 = vld [vmem:[%s4] sm:$0x7f]
      %v629 = vlaneseq
      %v630 = vshrl.u32 %v629, 7
      %v631 = vsub.s32 0, %v630
      %v632 = vrot.slane %v627, %v631
      %v633 = vlaneseq
      %v634 = vshrl.u32 %v633, 7
      %v635 = vsub.s32 1, %v634
      %v636 = vrot.slane %v627, %v635
      %v637 = vlaneseq
      %v638 = vshrl.u32 %v637, 7
      %v639 = vsub.s32 2, %v638
      %v640 = vrot.slane %v627, %v639
      %v641 = vlaneseq
      %v642 = vshrl.u32 %v641, 7
      %v643 = vsub.s32 3, %v642
      %v644 = vrot.slane %v627, %v643
      %v645 = vlaneseq
      %v646 = vshrl.u32 %v645, 7
      %v647 = vsub.s32 4, %v646
      %v648 = vrot.slane %v627, %v647
      %v649 = vlaneseq
      %v650 = vshrl.u32 %v649, 7
      %v651 = vsub.s32 5, %v650
      %v652 = vrot.slane %v627, %v651
      %v653 = vlaneseq
      %v654 = vshrl.u32 %v653, 7
      %v655 = vsub.s32 6, %v654
      %v656 = vrot.slane %v627, %v655
      %v696 = vunpack.c.l.b16 %v595
      %v697 = vunpack.c.h.b16 %v595
      %v698 = vunpack.c.l.b16 %v596
      %v699 = vunpack.c.h.b16 %v596
      %v700 = vunpack.c.l.b16 %v597
      %v701 = vunpack.c.h.b16 %v597
      %v702 = vunpack.c.l.b16 %v598
      %v703 = vunpack.c.l.b16 %v599
      %v704 = vunpack.c.h.b16 %v599
      %v705 = vunpack.c.l.b16 %v600
      %v706 = vunpack.c.h.b16 %v600
      %v707 = vunpack.c.l.b16 %v601
      %v708 = vunpack.c.h.b16 %v601
      %v709 = vunpack.c.l.b16 %v602
      %v710 = vunpack.c.l.b16 %v603
      %v711 = vunpack.c.h.b16 %v603
      %v712 = vunpack.c.l.b16 %v604
      %v713 = vunpack.c.h.b16 %v604
      %v714 = vunpack.c.l.b16 %v605
      %v715 = vunpack.c.h.b16 %v605
      %v716 = vunpack.c.l.b16 %v606
      %v717 = vunpack.c.l.b16 %v607
      %v718 = vunpack.c.h.b16 %v607
      %v719 = vunpack.c.l.b16 %v608
      %v720 = vunpack.c.h.b16 %v608
      %v721 = vunpack.c.l.b16 %v609
      %v722 = vunpack.c.h.b16 %v609
      %v723 = vunpack.c.l.b16 %v610
      %v724 = vunpack.c.l.b16 %v611
      %v725 = vunpack.c.h.b16 %v611
      %v726 = vunpack.c.l.b16 %v612
      %v727 = vunpack.c.h.b16 %v612
      %v728 = vunpack.c.l.b16 %v613
      %v729 = vunpack.c.h.b16 %v613
      %v730 = vunpack.c.l.b16 %v614
      %v731 = vunpack.c.l.b16 %v615
      %v732 = vunpack.c.h.b16 %v615
      %v733 = vunpack.c.l.b16 %v616
      %v734 = vunpack.c.h.b16 %v616
      %v735 = vunpack.c.l.b16 %v617
      %v736 = vunpack.c.h.b16 %v617
      %v737 = vunpack.c.l.b16 %v618
      %v738 = vunpack.c.l.b16 %v619
      %v739 = vunpack.c.h.b16 %v619
      %v740 = vunpack.c.l.b16 %v620
      %v741 = vunpack.c.h.b16 %v620
      %v742 = vunpack.c.l.b16 %v621
      %v743 = vunpack.c.h.b16 %v621
      %v744 = vunpack.c.l.b16 %v622
      %v745 = vunpack.c.l.b16 %v623
      %v746 = vunpack.c.h.b16 %v623
      %v747 = vunpack.c.l.b16 %v624
      %v748 = vunpack.c.h.b16 %v624
      %v749 = vunpack.c.l.b16 %v625
      %v750 = vunpack.c.h.b16 %v625
      %v751 = vunpack.c.l.b16 %v626
      %v752 = vpack.c.b16 %v703, %v696
      %v753 = vpack.c.b16 %v704, %v697
      %v754 = vpack.c.b16 %v705, %v698
      %v755 = vpack.c.b16 %v706, %v699
      %v756 = vpack.c.b16 %v707, %v700
      %v757 = vpack.c.b16 %v708, %v701
      %v758 = vpack.c.b16 %v709, %v702
      %v759 = vpack.c.b16 %v717, %v710
      %v760 = vpack.c.b16 %v718, %v711
      %v761 = vpack.c.b16 %v719, %v712
      %v762 = vpack.c.b16 %v720, %v713
      %v763 = vpack.c.b16 %v721, %v714
      %v764 = vpack.c.b16 %v722, %v715
      %v765 = vpack.c.b16 %v723, %v716
      %v766 = vpack.c.b16 %v731, %v724
      %v767 = vpack.c.b16 %v732, %v725
      %v768 = vpack.c.b16 %v733, %v726
      %v769 = vpack.c.b16 %v734, %v727
      %v770 = vpack.c.b16 %v735, %v728
      %v771 = vpack.c.b16 %v736, %v729
      %v772 = vpack.c.b16 %v737, %v730
      %v773 = vpack.c.b16 %v745, %v738
      %v774 = vpack.c.b16 %v746, %v739
      %v775 = vpack.c.b16 %v747, %v740
      %v776 = vpack.c.b16 %v748, %v741
      %v777 = vpack.c.b16 %v749, %v742
      %v778 = vpack.c.b16 %v750, %v743
      %v779 = vpack.c.b16 %v751, %v744
      %vm808 = vcmask 523264
      %v810 = vsel %vm808, %v587, 0
      %v813 = vsel %vm808, %v588, 0
      %v816 = vsel %vm808, %v589, 0
      %v819 = vsel %vm808, %v590, 0
      %v822 = vsel %vm808, %v591, 0
      %v825 = vsel %vm808, %v592, 0
      %v828 = vsel %vm808, %v593, 0
      %v831 = vsel %vm808, %v594, 0
      %833 = vmatprep.subr.bf16.mxu0 %v753
      %834 = vmatpush1.bf16.msra.mxu0 %v752
      %835 = vmatprep.subr.bf16.mxu0 %v760
      %836 = vmatpush1.bf16.msra.mxu0 %v759
      %837 = vmatprep.subr.bf16.mxu0 %v767
      %838 = vmatpush1.bf16.msra.mxu0 %v766
      %839 = vmatprep.subr.bf16.mxu0 %v774
      %840 = vmatpush1.bf16.msra.mxu0 %v773
      %841 = vmatprep.subr.bf16.mxu0 0
      %842 = vmatpush1.bf16.msra.mxu0 0
      %843 = vmatprep.subr.bf16.mxu0 0
      %844 = vmatpush1.bf16.msra.mxu0 0
      %845 = vmatprep.subr.bf16.mxu0 0
      %846 = vmatpush1.bf16.msra.mxu0 0
      %847 = vmatprep.subr.bf16.mxu0 0
      %848 = vmatpush1.bf16.msra.mxu0 0
      %849 = vmatprep.subr.bf16.mxu0 0
      %850 = vmatpush1.bf16.msra.mxu0 0
      %851 = vmatprep.subr.bf16.mxu0 0
      %852 = vmatpush1.bf16.msra.mxu0 0
      %853 = vmatprep.subr.bf16.mxu0 0
      %854 = vmatpush1.bf16.msra.mxu0 0
      %855 = vmatprep.subr.bf16.mxu0 0
      %856 = vmatpush1.bf16.msra.mxu0 0
      %857 = vmatprep.subr.bf16.mxu0 0
      %858 = vmatpush1.bf16.msra.mxu0 0
      %859 = vmatprep.subr.bf16.mxu0 0
      %860 = vmatpush1.bf16.msra.mxu0 0
      %861 = vmatprep.subr.bf16.mxu0 0
      %862 = vmatpush1.bf16.msra.mxu0 0
      %863 = vmatprep.subr.bf16.mxu0 0
      %864 = vmatpush1.bf16.msra.mxu0 0
      %865 = vmatprep.mubr.bf16.mxu0 0
      %866 = vmatmul.mubr.bf16.gmra.mrb[0].mxu0 %v810
      %v867 = vpop.f32.mrb[0].mxu0
      %v868 = vadd.f32 %v632, %v867
      %v869 = vpop.f32.mrb[0].mxu0
      %v870 = vadd.f32 %v636, %v869
      %v871 = vpop.f32.mrb[0].mxu0
      %v872 = vadd.f32 %v632, %v871
      %v873 = vpop.f32.mrb[0].mxu0
      %v874 = vadd.f32 %v636, %v873
      %875 = vmatprep.mubr.bf16.mxu0 0
      %876 = vmatmul.mubr.bf16.gmra.mrb[0].mxu0 %v813
      %v877 = vpop.f32.mrb[0].mxu0
      %v878 = vadd.f32 %v632, %v877
      %v879 = vpop.f32.mrb[0].mxu0
      %v880 = vadd.f32 %v636, %v879
      %v881 = vpop.f32.mrb[0].mxu0
      %v882 = vadd.f32 %v632, %v881
      %v883 = vpop.f32.mrb[0].mxu0
      %v884 = vadd.f32 %v636, %v883
      %885 = vmatprep.mubr.bf16.mxu0 0
      %886 = vmatmul.mubr.bf16.gmra.mrb[0].mxu0 %v816
      %v887 = vpop.f32.mrb[0].mxu0
      %v888 = vadd.f32 %v632, %v887
      %v889 = vpop.f32.mrb[0].mxu0
      %v890 = vadd.f32 %v636, %v889
      %v891 = vpop.f32.mrb[0].mxu0
      %v892 = vadd.f32 %v632, %v891
      %v893 = vpop.f32.mrb[0].mxu0
      %v894 = vadd.f32 %v636, %v893
      %895 = vmatprep.mubr.bf16.mxu0 0
      %896 = vmatmul.mubr.bf16.gmra.mrb[0].mxu0 %v819
      %v897 = vpop.f32.mrb[0].mxu0
      %v898 = vadd.f32 %v632, %v897
      %v899 = vpop.f32.mrb[0].mxu0
      %v900 = vadd.f32 %v636, %v899
      %v901 = vpop.f32.mrb[0].mxu0
      %v902 = vadd.f32 %v632, %v901
      %v903 = vpop.f32.mrb[0].mxu0
      %v904 = vadd.f32 %v636, %v903
      %905 = vmatprep.mubr.bf16.mxu0 0
      %906 = vmatmul.mubr.bf16.gmra.mrb[0].mxu0 %v822
      %v907 = vpop.f32.mrb[0].mxu0
      %v908 = vadd.f32 %v632, %v907
      %v909 = vpop.f32.mrb[0].mxu0
      %v910 = vadd.f32 %v636, %v909
      %v911 = vpop.f32.mrb[0].mxu0
      %v912 = vadd.f32 %v632, %v911
      %v913 = vpop.f32.mrb[0].mxu0
      %v914 = vadd.f32 %v636, %v913
      %915 = vmatprep.mubr.bf16.mxu0 0
      %916 = vmatmul.mubr.bf16.gmra.mrb[0].mxu0 %v825
      %v917 = vpop.f32.mrb[0].mxu0
      %v918 = vadd.f32 %v632, %v917
      %v919 = vpop.f32.mrb[0].mxu0
      %v920 = vadd.f32 %v636, %v919
      %v921 = vpop.f32.mrb[0].mxu0
      %v922 = vadd.f32 %v632, %v921
      %v923 = vpop.f32.mrb[0].mxu0
      %v924 = vadd.f32 %v636, %v923
      %925 = vmatprep.mubr.bf16.mxu0 0
      %926 = vmatmul.mubr.bf16.gmra.mrb[0].mxu0 %v828
      %v927 = vpop.f32.mrb[0].mxu0
      %v928 = vadd.f32 %v632, %v927
      %v929 = vpop.f32.mrb[0].mxu0
      %v930 = vadd.f32 %v636, %v929
      %v931 = vpop.f32.mrb[0].mxu0
      %v932 = vadd.f32 %v632, %v931
      %v933 = vpop.f32.mrb[0].mxu0
      %v934 = vadd.f32 %v636, %v933
      %935 = vmatprep.mubr.bf16.mxu0 0
      %936 = vmatmul.mubr.bf16.gmra.mrb[0].mxu0 %v831
      %v937 = vpop.f32.mrb[0].mxu0
      %v938 = vadd.f32 %v632, %v937
      %v939 = vpop.f32.mrb[0].mxu0
      %v940 = vadd.f32 %v636, %v939
      %v941 = vpop.f32.mrb[0].mxu0
      %v942 = vadd.f32 %v632, %v941
      %v943 = vpop.f32.mrb[0].mxu0
      %v944 = vadd.f32 %v636, %v943
      %945 = vdwg.mxu0
      %946 = vmatprep.subr.bf16.mxu0 %v755
      %947 = vmatpush1.bf16.msra.mxu0 %v754
      %948 = vmatprep.subr.bf16.mxu0 %v762
      %949 = vmatpush1.bf16.msra.mxu0 %v761
      %950 = vmatprep.subr.bf16.mxu0 %v769
      %951 = vmatpush1.bf16.msra.mxu0 %v768
      %952 = vmatprep.subr.bf16.mxu0 %v776
      %953 = vmatpush1.bf16.msra.mxu0 %v775
      %954 = vmatprep.subr.bf16.mxu0 0
      %955 = vmatpush1.bf16.msra.mxu0 0
      %956 = vmatprep.subr.bf16.mxu0 0
      %957 = vmatpush1.bf16.msra.mxu0 0
      %958 = vmatprep.subr.bf16.mxu0 0
      %959 = vmatpush1.bf16.msra.mxu0 0
      %960 = vmatprep.subr.bf16.mxu0 0
      %961 = vmatpush1.bf16.msra.mxu0 0
      %962 = vmatprep.subr.bf16.mxu0 0
      %963 = vmatpush1.bf16.msra.mxu0 0
      %964 = vmatprep.subr.bf16.mxu0 0
      %965 = vmatpush1.bf16.msra.mxu0 0
      %966 = vmatprep.subr.bf16.mxu0 0
      %967 = vmatpush1.bf16.msra.mxu0 0
      %968 = vmatprep.subr.bf16.mxu0 0
      %969 = vmatpush1.bf16.msra.mxu0 0
      %970 = vmatprep.subr.bf16.mxu0 0
      %971 = vmatpush1.bf16.msra.mxu0 0
      %972 = vmatprep.subr.bf16.mxu0 0
      %973 = vmatpush1.bf16.msra.mxu0 0
      %974 = vmatprep.subr.bf16.mxu0 0
      %975 = vmatpush1.bf16.msra.mxu0 0
      %976 = vmatprep.subr.bf16.mxu0 0
      %977 = vmatpush1.bf16.msra.mxu0 0
      %978 = vmatprep.mubr.bf16.mxu0 0
      %979 = vmatmul.mubr.bf16.gmra.mrb[0].mxu0 %v810
      %v980 = vpop.f32.mrb[0].mxu0
      %v981 = vadd.f32 %v640, %v980
      %v982 = vpop.f32.mrb[0].mxu0
      %v983 = vadd.f32 %v644, %v982
      %v984 = vpop.f32.mrb[0].mxu0
      %v985 = vadd.f32 %v640, %v984
      %v986 = vpop.f32.mrb[0].mxu0
      %v987 = vadd.f32 %v644, %v986
      %988 = vmatprep.mubr.bf16.mxu0 0
      %989 = vmatmul.mubr.bf16.gmra.mrb[0].mxu0 %v813
      %v990 = vpop.f32.mrb[0].mxu0
      %v991 = vadd.f32 %v640, %v990
      %v992 = vpop.f32.mrb[0].mxu0
      %v993 = vadd.f32 %v644, %v992
      %v994 = vpop.f32.mrb[0].mxu0
      %v995 = vadd.f32 %v640, %v994
      %v996 = vpop.f32.mrb[0].mxu0
      %v997 = vadd.f32 %v644, %v996
      %998 = vmatprep.mubr.bf16.mxu0 0
      %999 = vmatmul.mubr.bf16.gmra.mrb[0].mxu0 %v816
      %v1000 = vpop.f32.mrb[0].mxu0
      %v1001 = vadd.f32 %v640, %v1000
      %v1002 = vpop.f32.mrb[0].mxu0
      %v1003 = vadd.f32 %v644, %v1002
      %v1004 = vpop.f32.mrb[0].mxu0
      %v1005 = vadd.f32 %v640, %v1004
      %v1006 = vpop.f32.mrb[0].mxu0
      %v1007 = vadd.f32 %v644, %v1006
      %1008 = vmatprep.mubr.bf16.mxu0 0
      %1009 = vmatmul.mubr.bf16.gmra.mrb[0].mxu0 %v819
      %v1010 = vpop.f32.mrb[0].mxu0
      %v1011 = vadd.f32 %v640, %v1010
      %v1012 = vpop.f32.mrb[0].mxu0
      %v1013 = vadd.f32 %v644, %v1012
      %v1014 = vpop.f32.mrb[0].mxu0
      %v1015 = vadd.f32 %v640, %v1014
      %v1016 = vpop.f32.mrb[0].mxu0
      %v1017 = vadd.f32 %v644, %v1016
      %1018 = vmatprep.mubr.bf16.mxu0 0
      %1019 = vmatmul.mubr.bf16.gmra.mrb[0].mxu0 %v822
      %v1020 = vpop.f32.mrb[0].mxu0
      %v1021 = vadd.f32 %v640, %v1020
      %v1022 = vpop.f32.mrb[0].mxu0
      %v1023 = vadd.f32 %v644, %v1022
      %v1024 = vpop.f32.mrb[0].mxu0
      %v1025 = vadd.f32 %v640, %v1024
      %v1026 = vpop.f32.mrb[0].mxu0
      %v1027 = vadd.f32 %v644, %v1026
      %1028 = vmatprep.mubr.bf16.mxu0 0
      %1029 = vmatmul.mubr.bf16.gmra.mrb[0].mxu0 %v825
      %v1030 = vpop.f32.mrb[0].mxu0
      %v1031 = vadd.f32 %v640, %v1030
      %v1032 = vpop.f32.mrb[0].mxu0
      %v1033 = vadd.f32 %v644, %v1032
      %v1034 = vpop.f32.mrb[0].mxu0
      %v1035 = vadd.f32 %v640, %v1034
      %v1036 = vpop.f32.mrb[0].mxu0
      %v1037 = vadd.f32 %v644, %v1036
      %1038 = vmatprep.mubr.bf16.mxu0 0
      %1039 = vmatmul.mubr.bf16.gmra.mrb[0].mxu0 %v828
      %v1040 = vpop.f32.mrb[0].mxu0
      %v1041 = vadd.f32 %v640, %v1040
      %v1042 = vpop.f32.mrb[0].mxu0
      %v1043 = vadd.f32 %v644, %v1042
      %v1044 = vpop.f32.mrb[0].mxu0
      %v1045 = vadd.f32 %v640, %v1044
      %v1046 = vpop.f32.mrb[0].mxu0
      %v1047 = vadd.f32 %v644, %v1046
      %1048 = vmatprep.mubr.bf16.mxu0 0
      %1049 = vmatmul.mubr.bf16.gmra.mrb[0].mxu0 %v831
      %v1050 = vpop.f32.mrb[0].mxu0
      %v1051 = vadd.f32 %v640, %v1050
      %v1052 = vpop.f32.mrb[0].mxu0
      %v1053 = vadd.f32 %v644, %v1052
      %v1054 = vpop.f32.mrb[0].mxu0
      %v1055 = vadd.f32 %v640, %v1054
      %v1056 = vpop.f32.mrb[0].mxu0
      %v1057 = vadd.f32 %v644, %v1056
      %1058 = vdwg.mxu0
      %1059 = vmatprep.subr.bf16.mxu0 %v757
      %1060 = vmatpush1.bf16.msra.mxu0 %v756
      %1061 = vmatprep.subr.bf16.mxu0 %v764
      %1062 = vmatpush1.bf16.msra.mxu0 %v763
      %1063 = vmatprep.subr.bf16.mxu0 %v771
      %1064 = vmatpush1.bf16.msra.mxu0 %v770
      %1065 = vmatprep.subr.bf16.mxu0 %v778
      %1066 = vmatpush1.bf16.msra.mxu0 %v777
      %1067 = vmatprep.subr.bf16.mxu0 0
      %1068 = vmatpush1.bf16.msra.mxu0 0
      %1069 = vmatprep.subr.bf16.mxu0 0
      %1070 = vmatpush1.bf16.msra.mxu0 0
      %1071 = vmatprep.subr.bf16.mxu0 0
      %1072 = vmatpush1.bf16.msra.mxu0 0
      %1073 = vmatprep.subr.bf16.mxu0 0
      %1074 = vmatpush1.bf16.msra.mxu0 0
      %1075 = vmatprep.subr.bf16.mxu0 0
      %1076 = vmatpush1.bf16.msra.mxu0 0
      %1077 = vmatprep.subr.bf16.mxu0 0
      %1078 = vmatpush1.bf16.msra.mxu0 0
      %1079 = vmatprep.subr.bf16.mxu0 0
      %1080 = vmatpush1.bf16.msra.mxu0 0
      %1081 = vmatprep.subr.bf16.mxu0 0
      %1082 = vmatpush1.bf16.msra.mxu0 0
      %1083 = vmatprep.subr.bf16.mxu0 0
      %1084 = vmatpush1.bf16.msra.mxu0 0
      %1085 = vmatprep.subr.bf16.mxu0 0
      %1086 = vmatpush1.bf16.msra.mxu0 0
      %1087 = vmatprep.subr.bf16.mxu0 0
      %1088 = vmatpush1.bf16.msra.mxu0 0
      %1089 = vmatprep.subr.bf16.mxu0 0
      %1090 = vmatpush1.bf16.msra.mxu0 0
      %1091 = vmatprep.mubr.bf16.mxu0 0
      %1092 = vmatmul.mubr.bf16.gmra.mrb[0].mxu0 %v810
      %v1093 = vpop.f32.mrb[0].mxu0
      %v1094 = vadd.f32 %v648, %v1093
      %v1095 = vpop.f32.mrb[0].mxu0
      %v1096 = vadd.f32 %v652, %v1095
      %v1097 = vpop.f32.mrb[0].mxu0
      %v1098 = vadd.f32 %v648, %v1097
      %v1099 = vpop.f32.mrb[0].mxu0
      %v1100 = vadd.f32 %v652, %v1099
      %1101 = vmatprep.mubr.bf16.mxu0 0
      %1102 = vmatmul.mubr.bf16.gmra.mrb[0].mxu0 %v813
      %v1103 = vpop.f32.mrb[0].mxu0
      %v1104 = vadd.f32 %v648, %v1103
      %v1105 = vpop.f32.mrb[0].mxu0
      %v1106 = vadd.f32 %v652, %v1105
      %v1107 = vpop.f32.mrb[0].mxu0
      %v1108 = vadd.f32 %v648, %v1107
      %v1109 = vpop.f32.mrb[0].mxu0
      %v1110 = vadd.f32 %v652, %v1109
      %1111 = vmatprep.mubr.bf16.mxu0 0
      %1112 = vmatmul.mubr.bf16.gmra.mrb[0].mxu0 %v816
      %v1113 = vpop.f32.mrb[0].mxu0
      %v1114 = vadd.f32 %v648, %v1113
      %v1115 = vpop.f32.mrb[0].mxu0
      %v1116 = vadd.f32 %v652, %v1115
      %v1117 = vpop.f32.mrb[0].mxu0
      %v1118 = vadd.f32 %v648, %v1117
      %v1119 = vpop.f32.mrb[0].mxu0
      %v1120 = vadd.f32 %v652, %v1119
      %1121 = vmatprep.mubr.bf16.mxu0 0
      %1122 = vmatmul.mubr.bf16.gmra.mrb[0].mxu0 %v819
      %v1123 = vpop.f32.mrb[0].mxu0
      %v1124 = vadd.f32 %v648, %v1123
      %v1125 = vpop.f32.mrb[0].mxu0
      %v1126 = vadd.f32 %v652, %v1125
      %v1127 = vpop.f32.mrb[0].mxu0
      %v1128 = vadd.f32 %v648, %v1127
      %v1129 = vpop.f32.mrb[0].mxu0
      %v1130 = vadd.f32 %v652, %v1129
      %1131 = vmatprep.mubr.bf16.mxu0 0
      %1132 = vmatmul.mubr.bf16.gmra.mrb[0].mxu0 %v822
      %v1133 = vpop.f32.mrb[0].mxu0
      %v1134 = vadd.f32 %v648, %v1133
      %v1135 = vpop.f32.mrb[0].mxu0
      %v1136 = vadd.f32 %v652, %v1135
      %v1137 = vpop.f32.mrb[0].mxu0
      %v1138 = vadd.f32 %v648, %v1137
      %v1139 = vpop.f32.mrb[0].mxu0
      %v1140 = vadd.f32 %v652, %v1139
      %1141 = vmatprep.mubr.bf16.mxu0 0
      %1142 = vmatmul.mubr.bf16.gmra.mrb[0].mxu0 %v825
      %v1143 = vpop.f32.mrb[0].mxu0
      %v1144 = vadd.f32 %v648, %v1143
      %v1145 = vpop.f32.mrb[0].mxu0
      %v1146 = vadd.f32 %v652, %v1145
      %v1147 = vpop.f32.mrb[0].mxu0
      %v1148 = vadd.f32 %v648, %v1147
      %v1149 = vpop.f32.mrb[0].mxu0
      %v1150 = vadd.f32 %v652, %v1149
      %1151 = vmatprep.mubr.bf16.mxu0 0
      %1152 = vmatmul.mubr.bf16.gmra.mrb[0].mxu0 %v828
      %v1153 = vpop.f32.mrb[0].mxu0
      %v1154 = vadd.f32 %v648, %v1153
      %v1155 = vpop.f32.mrb[0].mxu0
      %v1156 = vadd.f32 %v652, %v1155
      %v1157 = vpop.f32.mrb[0].mxu0
      %v1158 = vadd.f32 %v648, %v1157
      %v1159 = vpop.f32.mrb[0].mxu0
      %v1160 = vadd.f32 %v652, %v1159
      %1161 = vmatprep.mubr.bf16.mxu0 0
      %1162 = vmatmul.mubr.bf16.gmra.mrb[0].mxu0 %v831
      %v1163 = vpop.f32.mrb[0].mxu0
      %v1164 = vadd.f32 %v648, %v1163
      %v1165 = vpop.f32.mrb[0].mxu0
      %v1166 = vadd.f32 %v652, %v1165
      %v1167 = vpop.f32.mrb[0].mxu0
      %v1168 = vadd.f32 %v648, %v1167
      %v1169 = vpop.f32.mrb[0].mxu0
      %v1170 = vadd.f32 %v652, %v1169
      %1171 = vdwg.mxu0
      %1172 = vmatprep.subr.bf16.mxu0 0
      %1173 = vmatpush1.bf16.msra.mxu0 %v758
      %1174 = vmatprep.subr.bf16.mxu0 0
      %1175 = vmatpush1.bf16.msra.mxu0 %v765
      %1176 = vmatprep.subr.bf16.mxu0 0
      %1177 = vmatpush1.bf16.msra.mxu0 %v772
      %1178 = vmatprep.subr.bf16.mxu0 0
      %1179 = vmatpush1.bf16.msra.mxu0 %v779
      %1180 = vmatprep.subr.bf16.mxu0 0
      %1181 = vmatpush1.bf16.msra.mxu0 0
      %1182 = vmatprep.subr.bf16.mxu0 0
      %1183 = vmatpush1.bf16.msra.mxu0 0
      %1184 = vmatprep.subr.bf16.mxu0 0
      %1185 = vmatpush1.bf16.msra.mxu0 0
      %1186 = vmatprep.subr.bf16.mxu0 0
      %1187 = vmatpush1.bf16.msra.mxu0 0
      %1188 = vmatprep.subr.bf16.mxu0 0
      %1189 = vmatpush1.bf16.msra.mxu0 0
      %1190 = vmatprep.subr.bf16.mxu0 0
      %1191 = vmatpush1.bf16.msra.mxu0 0
      %1192 = vmatprep.subr.bf16.mxu0 0
      %1193 = vmatpush1.bf16.msra.mxu0 0
      %1194 = vmatprep.subr.bf16.mxu0 0
      %1195 = vmatpush1.bf16.msra.mxu0 0
      %1196 = vmatprep.subr.bf16.mxu0 0
      %1197 = vmatpush1.bf16.msra.mxu0 0
      %1198 = vmatprep.subr.bf16.mxu0 0
      %1199 = vmatpush1.bf16.msra.mxu0 0
      %1200 = vmatprep.subr.bf16.mxu0 0
      %1201 = vmatpush1.bf16.msra.mxu0 0
      %1202 = vmatprep.subr.bf16.mxu0 0
      %1203 = vmatpush1.bf16.msra.mxu0 0
      %1204 = vmatprep.mubr.bf16.mxu0 0
      %1205 = vmatmul.mubr.bf16.gmra.mrb[0].mxu0 %v810
      %v1206 = vpop.f32.mrb[0].mxu0
      %v1207 = vadd.f32 %v656, %v1206
      %v1208 = vpop.f32.mrb[0].mxu0
      %v1209 = vpop.f32.mrb[0].mxu0
      %v1210 = vadd.f32 %v656, %v1209
      %v1211 = vpop.f32.mrb[0].mxu0
      %1212 = vmatprep.mubr.bf16.mxu0 0
      %1213 = vmatmul.mubr.bf16.gmra.mrb[0].mxu0 %v813
      %v1214 = vpop.f32.mrb[0].mxu0
      %v1215 = vadd.f32 %v656, %v1214
      %v1216 = vpop.f32.mrb[0].mxu0
      %v1217 = vpop.f32.mrb[0].mxu0
      %v1218 = vadd.f32 %v656, %v1217
      %v1219 = vpop.f32.mrb[0].mxu0
      %1220 = vmatprep.mubr.bf16.mxu0 0
      %1221 = vmatmul.mubr.bf16.gmra.mrb[0].mxu0 %v816
      %v1222 = vpop.f32.mrb[0].mxu0
      %v1223 = vadd.f32 %v656, %v1222
      %v1224 = vpop.f32.mrb[0].mxu0
      %v1225 = vpop.f32.mrb[0].mxu0
      %v1226 = vadd.f32 %v656, %v1225
      %v1227 = vpop.f32.mrb[0].mxu0
      %1228 = vmatprep.mubr.bf16.mxu0 0
      %1229 = vmatmul.mubr.bf16.gmra.mrb[0].mxu0 %v819
      %v1230 = vpop.f32.mrb[0].mxu0
      %v1231 = vadd.f32 %v656, %v1230
      %v1232 = vpop.f32.mrb[0].mxu0
      %v1233 = vpop.f32.mrb[0].mxu0
      %v1234 = vadd.f32 %v656, %v1233
      %v1235 = vpop.f32.mrb[0].mxu0
      %1236 = vmatprep.mubr.bf16.mxu0 0
      %1237 = vmatmul.mubr.bf16.gmra.mrb[0].mxu0 %v822
      %v1238 = vpop.f32.mrb[0].mxu0
      %v1239 = vadd.f32 %v656, %v1238
      %v1240 = vpop.f32.mrb[0].mxu0
      %v1241 = vpop.f32.mrb[0].mxu0
      %v1242 = vadd.f32 %v656, %v1241
      %v1243 = vpop.f32.mrb[0].mxu0
      %1244 = vmatprep.mubr.bf16.mxu0 0
      %1245 = vmatmul.mubr.bf16.gmra.mrb[0].mxu0 %v825
      %v1246 = vpop.f32.mrb[0].mxu0
      %v1247 = vadd.f32 %v656, %v1246
      %v1248 = vpop.f32.mrb[0].mxu0
      %v1249 = vpop.f32.mrb[0].mxu0
      %v1250 = vadd.f32 %v656, %v1249
      %v1251 = vpop.f32.mrb[0].mxu0
      %1252 = vmatprep.mubr.bf16.mxu0 0
      %1253 = vmatmul.mubr.bf16.gmra.mrb[0].mxu0 %v828
      %v1254 = vpop.f32.mrb[0].mxu0
      %v1255 = vadd.f32 %v656, %v1254
      %v1256 = vpop.f32.mrb[0].mxu0
      %v1257 = vpop.f32.mrb[0].mxu0
      %v1258 = vadd.f32 %v656, %v1257
      %v1259 = vpop.f32.mrb[0].mxu0
      %1260 = vmatprep.mubr.bf16.mxu0 0
      %1261 = vmatmul.mubr.bf16.gmra.mrb[0].mxu0 %v831
      %v1262 = vpop.f32.mrb[0].mxu0
      %v1263 = vadd.f32 %v656, %v1262
      %v1264 = vpop.f32.mrb[0].mxu0
      %v1265 = vpop.f32.mrb[0].mxu0
      %v1266 = vadd.f32 %v656, %v1265
      %v1267 = vpop.f32.mrb[0].mxu0
      %1268 = vdwg.mxu0
      %1269 = vst [vmem:[%s228] sm:$0xff] %v868
      %1270 = vst [vmem:[%s228 + $0x8] sm:$0xff] %v870
      %1271 = vst [vmem:[%s228 + $0x10] sm:$0xff] %v981
      %1272 = vst [vmem:[%s228 + $0x18] sm:$0xff] %v983
      %1273 = vst [vmem:[%s228 + $0x20] sm:$0xff] %v1094
      %1274 = vst [vmem:[%s228 + $0x28] sm:$0xff] %v1096
      %vm1275 = vcmask 130048
      %1276 = vst.msk [vmem:[%s228 + $0x30] sm:$0xff] %vm1275, %v1207
      %1277 = vst [vmem:[%s228 + $0x38] sm:$0xff] %v872
      %1278 = vst [vmem:[%s228 + $0x40] sm:$0xff] %v874
      %1279 = vst [vmem:[%s228 + $0x48] sm:$0xff] %v985
      %1280 = vst [vmem:[%s228 + $0x50] sm:$0xff] %v987
      %1281 = vst [vmem:[%s228 + $0x58] sm:$0xff] %v1098
      %1282 = vst [vmem:[%s228 + $0x60] sm:$0xff] %v1100
      %1283 = vst.msk [vmem:[%s228 + $0x68] sm:$0xff] %vm1275, %v1210
      %1284 = vst [vmem:[%s228 + $0x70] sm:$0xff] %v878
      %1285 = vst [vmem:[%s228 + $0x78] sm:$0xff] %v880
      %1286 = vst [vmem:[%s228 + $0x80] sm:$0xff] %v991
      %1287 = vst [vmem:[%s228 + $0x88] sm:$0xff] %v993
      %1288 = vst [vmem:[%s228 + $0x90] sm:$0xff] %v1104
      %1289 = vst [vmem:[%s228 + $0x98] sm:$0xff] %v1106
      %1290 = vst.msk [vmem:[%s228 + $0xa0] sm:$0xff] %vm1275, %v1215
      %1291 = vst [vmem:[%s228 + $0xa8] sm:$0xff] %v882
      %1292 = vst [vmem:[%s228 + $0xb0] sm:$0xff] %v884
      %1293 = vst [vmem:[%s228 + $0xb8] sm:$0xff] %v995
      %1294 = vst [vmem:[%s228 + $0xc0] sm:$0xff] %v997
      %1295 = vst [vmem:[%s228 + $0xc8] sm:$0xff] %v1108
      %1296 = vst [vmem:[%s228 + $0xd0] sm:$0xff] %v1110
      %1297 = vst.msk [vmem:[%s228 + $0xd8] sm:$0xff] %vm1275, %v1218
      %1298 = vst [vmem:[%s228 + $0xe0] sm:$0xff] %v888
      %1299 = vst [vmem:[%s228 + $0xe8] sm:$0xff] %v890
      %1300 = vst [vmem:[%s228 + $0xf0] sm:$0xff] %v1001
      %1301 = vst [vmem:[%s228 + $0xf8] sm:$0xff] %v1003
      %1302 = vst [vmem:[%s228 + $0x100] sm:$0xff] %v1114
      %1303 = vst [vmem:[%s228 + $0x108] sm:$0xff] %v1116
      %1304 = vst.msk [vmem:[%s228 + $0x110] sm:$0xff] %vm1275, %v1223
      %1305 = vst [vmem:[%s228 + $0x118] sm:$0xff] %v892
      %1306 = vst [vmem:[%s228 + $0x120] sm:$0xff] %v894
      %1307 = vst [vmem:[%s228 + $0x128] sm:$0xff] %v1005
      %1308 = vst [vmem:[%s228 + $0x130] sm:$0xff] %v1007
      %1309 = vst [vmem:[%s228 + $0x138] sm:$0xff] %v1118
      %1310 = vst [vmem:[%s228 + $0x140] sm:$0xff] %v1120
      %1311 = vst.msk [vmem:[%s228 + $0x148] sm:$0xff] %vm1275, %v1226
      %1312 = vst [vmem:[%s228 + $0x150] sm:$0xff] %v898
      %1313 = vst [vmem:[%s228 + $0x158] sm:$0xff] %v900
      %1314 = vst [vmem:[%s228 + $0x160] sm:$0xff] %v1011
      %1315 = vst [vmem:[%s228 + $0x168] sm:$0xff] %v1013
      %1316 = vst [vmem:[%s228 + $0x170] sm:$0xff] %v1124
      %1317 = vst [vmem:[%s228 + $0x178] sm:$0xff] %v1126
      %1318 = vst.msk [vmem:[%s228 + $0x180] sm:$0xff] %vm1275, %v1231
      %1319 = vst [vmem:[%s228 + $0x188] sm:$0xff] %v902
      %1320 = vst [vmem:[%s228 + $0x190] sm:$0xff] %v904
      %1321 = vst [vmem:[%s228 + $0x198] sm:$0xff] %v1015
      %1322 = vst [vmem:[%s228 + $0x1a0] sm:$0xff] %v1017
      %1323 = vst [vmem:[%s228 + $0x1a8] sm:$0xff] %v1128
      %1324 = vst [vmem:[%s228 + $0x1b0] sm:$0xff] %v1130
      %1325 = vst.msk [vmem:[%s228 + $0x1b8] sm:$0xff] %vm1275, %v1234
      %1326 = vst [vmem:[%s228 + $0x1c0] sm:$0xff] %v908
      %1327 = vst [vmem:[%s228 + $0x1c8] sm:$0xff] %v910
      %1328 = vst [vmem:[%s228 + $0x1d0] sm:$0xff] %v1021
      %1329 = vst [vmem:[%s228 + $0x1d8] sm:$0xff] %v1023
      %1330 = vst [vmem:[%s228 + $0x1e0] sm:$0xff] %v1134
      %1331 = vst [vmem:[%s228 + $0x1e8] sm:$0xff] %v1136
      %1332 = vst.msk [vmem:[%s228 + $0x1f0] sm:$0xff] %vm1275, %v1239
      %1333 = vst [vmem:[%s228 + $0x1f8] sm:$0xff] %v912
      %1334 = vst [vmem:[%s228 + $0x200] sm:$0xff] %v914
      %1335 = vst [vmem:[%s228 + $0x208] sm:$0xff] %v1025
      %1336 = vst [vmem:[%s228 + $0x210] sm:$0xff] %v1027
      %1337 = vst [vmem:[%s228 + $0x218] sm:$0xff] %v1138
      %1338 = vst [vmem:[%s228 + $0x220] sm:$0xff] %v1140
      %1339 = vst.msk [vmem:[%s228 + $0x228] sm:$0xff] %vm1275, %v1242
      %1340 = vst [vmem:[%s228 + $0x230] sm:$0xff] %v918
      %1341 = vst [vmem:[%s228 + $0x238] sm:$0xff] %v920
      %1342 = vst [vmem:[%s228 + $0x240] sm:$0xff] %v1031
      %1343 = vst [vmem:[%s228 + $0x248] sm:$0xff] %v1033
      %1344 = vst [vmem:[%s228 + $0x250] sm:$0xff] %v1144
      %1345 = vst [vmem:[%s228 + $0x258] sm:$0xff] %v1146
      %1346 = vst.msk [vmem:[%s228 + $0x260] sm:$0xff] %vm1275, %v1247
      %1347 = vst [vmem:[%s228 + $0x268] sm:$0xff] %v922
      %1348 = vst [vmem:[%s228 + $0x270] sm:$0xff] %v924
      %1349 = vst [vmem:[%s228 + $0x278] sm:$0xff] %v1035
      %1350 = vst [vmem:[%s228 + $0x280] sm:$0xff] %v1037
      %1351 = vst [vmem:[%s228 + $0x288] sm:$0xff] %v1148
      %1352 = vst [vmem:[%s228 + $0x290] sm:$0xff] %v1150
      %1353 = vst.msk [vmem:[%s228 + $0x298] sm:$0xff] %vm1275, %v1250
      %1354 = vst [vmem:[%s228 + $0x2a0] sm:$0xff] %v928
      %1355 = vst [vmem:[%s228 + $0x2a8] sm:$0xff] %v930
      %1356 = vst [vmem:[%s228 + $0x2b0] sm:$0xff] %v1041
      %1357 = vst [vmem:[%s228 + $0x2b8] sm:$0xff] %v1043
      %1358 = vst [vmem:[%s228 + $0x2c0] sm:$0xff] %v1154
      %1359 = vst [vmem:[%s228 + $0x2c8] sm:$0xff] %v1156
      %1360 = vst.msk [vmem:[%s228 + $0x2d0] sm:$0xff] %vm1275, %v1255
      %1361 = vst [vmem:[%s228 + $0x2d8] sm:$0xff] %v932
      %1362 = vst [vmem:[%s228 + $0x2e0] sm:$0xff] %v934
      %1363 = vst [vmem:[%s228 + $0x2e8] sm:$0xff] %v1045
      %1364 = vst [vmem:[%s228 + $0x2f0] sm:$0xff] %v1047
      %1365 = vst [vmem:[%s228 + $0x2f8] sm:$0xff] %v1158
      %1366 = vst [vmem:[%s228 + $0x300] sm:$0xff] %v1160
      %1367 = vst.msk [vmem:[%s228 + $0x308] sm:$0xff] %vm1275, %v1258
      %1368 = vst [vmem:[%s228 + $0x310] sm:$0xff] %v938
      %1369 = vst [vmem:[%s228 + $0x318] sm:$0xff] %v940
      %1370 = vst [vmem:[%s228 + $0x320] sm:$0xff] %v1051
      %1371 = vst [vmem:[%s228 + $0x328] sm:$0xff] %v1053
      %1372 = vst [vmem:[%s228 + $0x330] sm:$0xff] %v1164
      %1373 = vst [vmem:[%s228 + $0x338] sm:$0xff] %v1166
      %1374 = vst.msk [vmem:[%s228 + $0x340] sm:$0xff] %vm1275, %v1263
      %1375 = vst [vmem:[%s228 + $0x348] sm:$0xff] %v942
      %1376 = vst [vmem:[%s228 + $0x350] sm:$0xff] %v944
      %1377 = vst [vmem:[%s228 + $0x358] sm:$0xff] %v1055
      %1378 = vst [vmem:[%s228 + $0x360] sm:$0xff] %v1057
      %1379 = vst [vmem:[%s228 + $0x368] sm:$0xff] %v1168
      %1380 = vst [vmem:[%s228 + $0x370] sm:$0xff] %v1170
      %1381 = vst.msk [vmem:[%s228 + $0x378] sm:$0xff] %vm1275, %v1266
      %s1382 = smul.u32 16, %s16
      %p1383 = scmp.lt.s32.totalorder %s1382, 31
      %s1384 = scalar_select %p1383, %s1382, 31
      %s1385 = smul.addr %s1384, 7
      %s1386 = smul.addr %s1385, 8
      %s1387 = scalar_lea.vmem %s5, %s1386
      // Predicated region
      $region41: #{tpu_custom_call.1} parent=39 // pred_check
        %p1388 = pneg %p144
      $region42: #{tpu_custom_call.1} parent=39 // pred_check_branch
        %1390 = sbr.rel (%p1388) target = $region44
      $region43: #{tpu_custom_call.1} parent=39 // pred_region
        %s1391 = smul.u32 16, %s16
      $region44: #{tpu_custom_call.1} parent=39 // pred_fallthru
        _
    $region40: #{tpu_custom_call.1} parent=5 // pred_fallthru
      _
    %p1392 = scmp.le.s32.totalorder 2, %s11
    // Predicated region
    $region45: #{tpu_custom_call.1} parent=5 // pred_check
      %p1393 = pneg %p1392
    $region46: #{tpu_custom_call.1} parent=5 // pred_check_branch
      %1395 = sbr.rel (%p1393) target = $region48
    $region47: #{tpu_custom_call.1} parent=5 // pred_region
      %s1396 = ssub.s32 %s11, 2
      // Predicated region
      $region49: #{tpu_custom_call.1} parent=47 // pred_check
        %p1397 = pneg %p150
      $region50: #{tpu_custom_call.1} parent=47 // pred_check_branch
        %1399 = sbr.rel (%p1397) target = $region52
      $region51: #{tpu_custom_call.1} parent=47 // pred_region
        %s1400 = smul.u32 16, %s17
        %p1401 = scmp.lt.s32.totalorder %s1400, 31
        %s1402 = scalar_select %p1401, %s1400, 31
        %s1403 = smul.addr %s1402, 7
        %s1404 = smul.addr %s1403, 8
        %s1405 = scalar_lea.vmem %s5, %s1404
      $region52: #{tpu_custom_call.1} parent=47 // pred_fallthru
        _
    $region48: #{tpu_custom_call.1} parent=5 // pred_fallthru
      _
  $region6: #{tpu_custom_call.1} parent=0 // loop_footer
    %s15 = sadd.s32 1, %s11
  $region7: #{tpu_custom_call.1} parent=0 // loop_footer_branch
    %10 = sbr.rel target = $region3
  $region8: #{tpu_custom_call.1} parent=0 // loop_exit
    _

</llo_original>
